<compile_context>
chip_gen: v5e
topology: v5e:2x2
jax: 0.10.0
libtpu: 0.0.40
codegen_flags: <defaults>
</compile_context>

<pallas_src>
import functools

import jax
import jax.numpy as jnp
from jax import lax
from jax.experimental import pallas as pl
from jax.experimental.pallas import tpu as pltpu


def _round_up(n, m):
    return ((n + m - 1) // m) * m


def _vmem_capacity_bytes():
    try:
        return int(pltpu.get_tpu_info().vmem_capacity_bytes)
    except Exception:
        return 64 << 20          # conservative fallback: v7x per-TensorCore VMEM


def _plan(M, B, Ci, Co):
    """Choose (TM, Tco, Mp, Co_p, vmem_limit_bytes, unroll).

    Constraints enforced (no silent floors):
      * Tco multiple of 8, divides Co_p                     (clean sublane tiles)
      * Tco * TM <= 8192  -> 2 f32 accumulators <= 64 KiB   (~16 vregs live)
      * double-buffered x/w/out tiles <= half of this chip's VMEM
    """
    Co_p = _round_up(Co, 8)
    Mp128 = _round_up(max(M, 1), 128)

    cap = _vmem_capacity_bytes()
    budget = cap // 2                       # double-buffered tiles use <= half of VMEM
    ACC_ELEMS = 8 * 1024                    # Tco * TM cap

    def db_bytes(tm, tco):
        x_t = 2 * B * Ci * tm * 4
        w_t = 3 * Ci * tco * tm * 4
        o_t = 2 * B * tco * tm * 4
        return 2 * (x_t + w_t + o_t)        # 2-deep pipelining

    def best_tco(tm):
        tco = min(Co_p, (ACC_ELEMS // tm) // 8 * 8)
        while tco >= 8:
            if Co_p % tco == 0 and db_bytes(tm, tco) <= budget:
                return tco
            tco -= 8
        return 0

    # Lane tile: as large as possible, but expose >= 4 mode grid steps on big
    # mode axes so the pipeline hides the DMA behind the VALU work.
    if Mp128 >= 4096:
        tm_cap = 1024
    elif Mp128 >= 2048:
        tm_cap = 512
    else:
        tm_cap = Mp128
    candidates = [t for t in (1024, 512, 256, 128) if t <= min(tm_cap, Mp128)]
    if not candidates:
        candidates = [128]

    for tm in candidates:
        tco = best_tco(tm)
        if tco:
            Mp = _round_up(M, tm)
            limit = int(min(cap * 9 // 10, db_bytes(tm, tco) + (4 << 20)))
            limit = min(max(limit, 16 << 20), cap)
            if Ci % 4 == 0 and tco * tm <= 4096:
                unroll = 4
            elif Ci % 2 == 0:
                unroll = 2
            else:
                unroll = 1
            return tm, tco, Mp, Co_p, limit, unroll

    raise ValueError(
        f"FFTConv3d Pallas plan failed (B={B}, Ci={Ci}, Co={Co}, M={M}): even the "
        "smallest tile (Tco=8, TM=128) exceeds the VMEM budget; split Ci across an "
        "extra (reduction) grid axis to support this configuration.")


def _cmul_kernel(x_ref, w_ref, o_ref, *, batch, ci, unroll):
    """Per-mode complex channel contraction on one (mode-tile, Co-chunk) block.

    x_ref: (2, B, Ci, TM)    planes (xr, xi)
    w_ref: (3, Ci, Tco, TM)  planes (wr, wi-wr, wr+wi)   [Gauss 3-mult]
    o_ref: (2, B, Tco, TM)   planes (out_r, out_i)
    """
    tco, tm = o_ref.shape[2], o_ref.shape[3]

    # Zero-cost ref views (no loads).
    wr_ref = w_ref.at[0]
    wd_ref = w_ref.at[1]
    ws_ref = w_ref.at[2]

    for b in range(batch):                  # batch is small; accs die at each store
        xr_ref = x_ref.at[0, b]             # (Ci, TM) view
        xi_ref = x_ref.at[1, b]

        def body(i, carry):
            acc_r, acc_i = carry
            xr = xr_ref[pl.ds(i, 1), :]     # (1, TM)
            xi = xi_ref[pl.ds(i, 1), :]     # (1, TM)
            wr = wr_ref[i]                  # (Tco, TM)
            wd = wd_ref[i]                  # wi - wr
            ws = ws_ref[i]                  # wr + wi
            k1 = (xr + xi) * wr             # 3 muls + 4 adds per term (Gauss)
            acc_r = acc_r + (k1 - xi * ws)
            acc_i = acc_i + (k1 + xr * wd)
            return acc_r, acc_i

        zero = jnp.zeros((tco, tm), jnp.float32)
        acc_r, acc_i = lax.fori_loop(0, ci, body, (zero, zero), unroll=unroll)

        # Sublane- and lane-dense stores, no in-kernel reshape.
        o_ref[0, b, :, :] = acc_r
        o_ref[1, b, :, :] = acc_i


def _cmul3d_pallas(x_packed, w_packed, B, Ci, Co_p, M, TM, Tco, vmem_limit, unroll):
    """Pallas-backed einsum('bim,iom->bom') on packed real/imag planes."""
    Mp = x_packed.shape[-1]
    grid = (Mp // TM, Co_p // Tco)          # Co chunk innermost: x tile reused across it

    cost = pl.CostEstimate(
        flops=8 * B * Ci * Co_p * M,
        transcendentals=0,
        bytes_accessed=4 * Mp * (2 * B * Ci + 3 * Ci * Co_p + 2 * B * Co_p),
    )

    kernel = functools.partial(_cmul_kernel, batch=B, ci=Ci, unroll=unroll)
    return pl.pallas_call(
        kernel,
        out_shape=jax.ShapeDtypeStruct((2, B, Co_p, Mp), jnp.float32),
        grid_spec=pltpu.PrefetchScalarGridSpec(
            num_scalar_prefetch=0,
            grid=grid,
            in_specs=[
                pl.BlockSpec((2, B, Ci, TM), lambda t, c: (0, 0, 0, t)),
                pl.BlockSpec((3, Ci, Tco, TM), lambda t, c: (0, 0, c, t)),
            ],
            out_specs=pl.BlockSpec((2, B, Tco, TM), lambda t, c: (0, 0, c, t)),
        ),
        compiler_params=pltpu.CompilerParams(
            dimension_semantics=("parallel", "parallel"),
            vmem_limit_bytes=vmem_limit,
        ),
        cost_estimate=cost,
    )(x_packed, w_packed)


def pack_weights(w_complex, modes, batch_size):
    """Pack the spectral weights ONCE (call outside jit).

    w_complex: (Cin, Cout, 2m, 2m, m) complex64
    returns    (3, Cin, Co_p, Mp) float32, planes (wr, wi-wr, wr+wi).
    NOTE: the packing bakes in (batch, Cin, Cout, modes); using a different
    runtime batch size trips the shape assert in fft_conv3d_packed.
    """
    Ci, Co = int(w_complex.shape[0]), int(w_complex.shape[1])
    m = int(modes)
    M = (2 * m) * (2 * m) * m
    _, _, Mp, Co_p, _, _ = _plan(M, int(batch_size), Ci, Co)

    wr = jnp.real(w_complex).astype(jnp.float32).reshape(Ci, Co, M)
    wi = jnp.imag(w_complex).astype(jnp.float32).reshape(Ci, Co, M)
    planes = jnp.stack([wr, wi - wr, wr + wi], axis=0)           # (3, Ci, Co, M)
    planes = jnp.pad(planes, ((0, 0), (0, 0), (0, Co_p - Co), (0, Mp - M)))
    return planes


@functools.partial(jax.jit, static_argnums=(2, 3))
def fft_conv3d_packed(x, w_packed, modes, out_channels):
    """Forward pass of FFTConv3d with pre-packed weights.

    x:        (B, Cin, X, Y, Z) float32
    w_packed: (3, Cin, Co_p, Mp) float32 from pack_weights()
    returns   (B, Cout, X, Y, Z) float32
    """
    B, Ci, X, Y, Z = x.shape
    Co = out_channels
    m = modes
    M = (2 * m) * (2 * m) * m
    TM, Tco, Mp, Co_p, vmem_limit, unroll = _plan(M, B, Ci, Co)
    assert w_packed.shape == (3, Ci, Co_p, Mp), (
        "w_packed was packed for a different (batch, channels, modes) configuration")

    Zr = Z // 2 + 1

    # --- FFT glue ---
    # TODO(synk): rfftn / irfftn stay in XLA -- no Pallas FFT primitive on TPU.
    xf = jnp.fft.rfftn(x, axes=(-3, -2, -1))                      # (B, Ci, X, Y, Zr) c64

    # Corner-mode gather: identical to fftshift + center slice, but only moves
    # the (2m, 2m, m) block instead of copying the whole spectrum.
    xf = jnp.concatenate([xf[:, :, X - m:, :, :], xf[:, :, :m, :, :]], axis=2)
    xs = jnp.concatenate([xf[:, :, :, Y - m:, :], xf[:, :, :, :m, :]], axis=3)[..., :m]
    # xs: (B, Ci, 2m, 2m, m)

    # Pack as (2, B, Ci, Mp): no batch/channel transpose; modes ride on lanes.
    xr = jnp.real(xs).astype(jnp.float32).reshape(B, Ci, M)
    xi = jnp.imag(xs).astype(jnp.float32).reshape(B, Ci, M)
    x_packed = jnp.stack([xr, xi], axis=0)                        # (2, B, Ci, M)
    if Mp != M:
        x_packed = jnp.pad(x_packed, ((0, 0), (0, 0), (0, 0), (0, Mp - M)))

    # --- hot path in Pallas: per-mode complex contraction over Cin ---
    out_pl = _cmul3d_pallas(x_packed, w_packed, B, Ci, Co_p, M,
                            TM, Tco, vmem_limit, unroll)          # (2, B, Co_p, Mp)
    out_modes = (out_pl[0, :, :Co, :M] + 1j * out_pl[1, :, :Co, :M]).astype(jnp.complex64)
    out_modes = out_modes.reshape(B, Co, 2 * m, 2 * m, m)

    # Scatter into the unshifted corner indices (== set in shifted coordinates
    # followed by ifftshift), then inverse FFT.
    out_ft = jnp.zeros((B, Co, X, Y, Zr), jnp.complex64)
    out_ft = out_ft.at[:, :, X - m:, Y - m:, :m].set(out_modes[:, :, :m, :m])
    out_ft = out_ft.at[:, :, X - m:, :m, :m].set(out_modes[:, :, :m, m:])
    out_ft = out_ft.at[:, :, :m, Y - m:, :m].set(out_modes[:, :, m:, :m])
    out_ft = out_ft.at[:, :, :m, :m, :m].set(out_modes[:, :, m:, m:])

    out = jnp.fft.irfftn(out_ft, s=(X, Y, Z), axes=(-3, -2, -1))
    return out.astype(jnp.float32)


def fft_conv3d(x, w_complex, modes):
    """Convenience wrapper matching the original signature (packs weights)."""
    B = int(x.shape[0])
    Co = int(w_complex.shape[1])
    w_packed = pack_weights(w_complex, modes, B)
    return fft_conv3d_packed(x, w_packed, modes, Co)


def fft_conv3d_reference(x, w_complex, modes):
    """Pure-JAX mirror of the PyTorch module (fftshift path, complex einsum)."""
    B, Ci, X, Y, Z = x.shape
    Co = w_complex.shape[1]
    m = modes
    cx, cy = X // 2, Y // 2
    xf = jnp.fft.rfftn(x, axes=(-3, -2, -1))
    xf = jnp.fft.fftshift(xf, axes=(-3, -2))
    xs = xf[..., cx - m:cx + m, cy - m:cy + m, :m]
    out_modes = jnp.einsum('bixyz,ioxyz->boxyz', xs, w_complex)
    out_ft = jnp.zeros((B, Co, X, Y, Z // 2 + 1), jnp.complex64)
    out_ft = out_ft.at[..., cx - m:cx + m, cy - m:cy + m, :m].set(out_modes)
    out_ft = jnp.fft.ifftshift(out_ft, axes=(-3, -2))
    return jnp.fft.irfftn(out_ft, s=(X, Y, Z), axes=(-3, -2, -1)).astype(jnp.float32)


if __name__ == "__main__":
    # Small shapes consistent with the module.
    B, Cin, Cout = 2, 4, 4
    X, Y, Z = 16, 16, 8
    modes = 4  # needs 2*modes <= X, Y and modes <= Z//2+1

    key = jax.random.PRNGKey(0)
    kx, kw = jax.random.split(key)

    x = jax.random.normal(kx, (B, Cin, X, Y, Z), dtype=jnp.float32)

    # torch.rand(...) / (in_channels * out_channels), last dim 2 = (real, imag)
    w_ri = jax.random.uniform(
        kw, (Cin, Cout, 2 * modes, 2 * modes, modes, 2), dtype=jnp.float32
    ) / (Cin * Cout)
    w_complex = (w_ri[..., 0] + 1j * w_ri[..., 1]).astype(jnp.complex64)

    # Pack / pad weights once, outside the jitted forward.
    w_packed = pack_weights(w_complex, modes, B)

    out = fft_conv3d_packed(x, w_packed, modes, Cout)
    out = jax.block_until_ready(out)

    ref = fft_conv3d_reference(x, w_complex, modes)
    assert out.shape == (B, Cout, X, Y, Z)
    assert jnp.allclose(out, ref, atol=1e-4, rtol=1e-4), "mismatch vs reference"

    print("KERNEL_OK")
</pallas_src>

<mosaic_0001>
module attributes {stable_mosaic.version = 11 : i64} {
  func.func @_cmul_kernel(%arg0: i32, %arg1: i32, %arg2: memref<2x2x4x256xf32, #tpu.memory_space<vmem>>, %arg3: memref<3x4x8x256xf32, #tpu.memory_space<vmem>>, %arg4: memref<2x2x8x256xf32, #tpu.memory_space<vmem>>) attributes {dimension_semantics = [#tpu.dimension_semantics<parallel>, #tpu.dimension_semantics<parallel>], iteration_bounds = array<i64: 1, 1>, scalar_prefetch = 0 : i64, scratch_operands = 0 : i64, tpu.core_type = #tpu.core_type<tc>, window_params = [{transform_indices = @transform_0, window_bounds = array<i64: 2, 2, 4, 256>}, {transform_indices = @transform_1, window_bounds = array<i64: 3, 4, 8, 256>}, {transform_indices = @transform_2, window_bounds = array<i64: 2, 2, 8, 256>}]} {
    %cst = arith.constant 0.000000e+00 : f32
    %0 = vector.broadcast %cst : f32 to vector<8x256xf32>
    %c0_i32 = arith.constant 0 : i32
    %c0_i32_0 = arith.constant 0 : i32
    %c1_i32 = arith.constant 1 : i32
    %c0_i32_1 = arith.constant 0 : i32
    %c0_i32_2 = arith.constant 0 : i32
    %c1_i32_3 = arith.constant 1 : i32
    %c2_i32 = arith.constant 2 : i32
    %c0_i32_4 = arith.constant 0 : i32
    %c0_i32_5 = arith.constant 0 : i32
    %c0_i32_6 = arith.constant 0 : i32
    %1 = tpu.memref_slice %arg2[%c0_i32, %c0_i32_0, %c0_i32_5, %c0_i32_6] : memref<2x2x4x256xf32, #tpu.memory_space<vmem>> -> memref<1x1x4x256xf32, #tpu.memory_space<vmem>>
    %2 = tpu.memref_squeeze %1 : memref<1x1x4x256xf32, #tpu.memory_space<vmem>> -> memref<4x256xf32, #tpu.memory_space<vmem>>
    %3 = arith.index_cast %c0_i32_4 : i32 to index
    %c0 = arith.constant 0 : index
    %4 = vector.load %2[%3, %c0] : memref<4x256xf32, #tpu.memory_space<vmem>>, vector<1x256xf32>
    %c0_i32_7 = arith.constant 0 : i32
    %c0_i32_8 = arith.constant 0 : i32
    %5 = tpu.memref_slice %arg2[%c1_i32, %c0_i32_1, %c0_i32_7, %c0_i32_8] : memref<2x2x4x256xf32, #tpu.memory_space<vmem>> -> memref<1x1x4x256xf32, #tpu.memory_space<vmem>>
    %6 = tpu.memref_squeeze %5 : memref<1x1x4x256xf32, #tpu.memory_space<vmem>> -> memref<4x256xf32, #tpu.memory_space<vmem>>
    %7 = arith.index_cast %c0_i32_4 : i32 to index
    %c0_9 = arith.constant 0 : index
    %8 = vector.load %6[%7, %c0_9] : memref<4x256xf32, #tpu.memory_space<vmem>>, vector<1x256xf32>
    %c0_i32_10 = arith.constant 0 : i32
    %c0_i32_11 = arith.constant 0 : i32
    %c0_i32_12 = arith.constant 0 : i32
    %9 = tpu.memref_slice %arg3[%c0_i32_2, %c0_i32_10, %c0_i32_11, %c0_i32_12] : memref<3x4x8x256xf32, #tpu.memory_space<vmem>> -> memref<1x4x8x256xf32, #tpu.memory_space<vmem>>
    %10 = tpu.memref_squeeze %9 : memref<1x4x8x256xf32, #tpu.memory_space<vmem>> -> memref<4x8x256xf32, #tpu.memory_space<vmem>>
    %11 = arith.index_cast %c0_i32_4 : i32 to index
    %c0_13 = arith.constant 0 : index
    %c0_14 = arith.constant 0 : index
    %12 = vector.load %10[%11, %c0_13, %c0_14] : memref<4x8x256xf32, #tpu.memory_space<vmem>>, vector<1x8x256xf32>
    %13 = vector.shape_cast %12 : vector<1x8x256xf32> to vector<8x256xf32>
    %c0_i32_15 = arith.constant 0 : i32
    %c0_i32_16 = arith.constant 0 : i32
    %c0_i32_17 = arith.constant 0 : i32
    %14 = tpu.memref_slice %arg3[%c1_i32_3, %c0_i32_15, %c0_i32_16, %c0_i32_17] : memref<3x4x8x256xf32, #tpu.memory_space<vmem>> -> memref<1x4x8x256xf32, #tpu.memory_space<vmem>>
    %15 = tpu.memref_squeeze %14 : memref<1x4x8x256xf32, #tpu.memory_space<vmem>> -> memref<4x8x256xf32, #tpu.memory_space<vmem>>
    %16 = arith.index_cast %c0_i32_4 : i32 to index
    %c0_18 = arith.constant 0 : index
    %c0_19 = arith.constant 0 : index
    %17 = vector.load %15[%16, %c0_18, %c0_19] : memref<4x8x256xf32, #tpu.memory_space<vmem>>, vector<1x8x256xf32>
    %18 = vector.shape_cast %17 : vector<1x8x256xf32> to vector<8x256xf32>
    %c0_i32_20 = arith.constant 0 : i32
    %c0_i32_21 = arith.constant 0 : i32
    %c0_i32_22 = arith.constant 0 : i32
    %19 = tpu.memref_slice %arg3[%c2_i32, %c0_i32_20, %c0_i32_21, %c0_i32_22] : memref<3x4x8x256xf32, #tpu.memory_space<vmem>> -> memref<1x4x8x256xf32, #tpu.memory_space<vmem>>
    %20 = tpu.memref_squeeze %19 : memref<1x4x8x256xf32, #tpu.memory_space<vmem>> -> memref<4x8x256xf32, #tpu.memory_space<vmem>>
    %21 = arith.index_cast %c0_i32_4 : i32 to index
    %c0_23 = arith.constant 0 : index
    %c0_24 = arith.constant 0 : index
    %22 = vector.load %20[%21, %c0_23, %c0_24] : memref<4x8x256xf32, #tpu.memory_space<vmem>>, vector<1x8x256xf32>
    %23 = vector.shape_cast %22 : vector<1x8x256xf32> to vector<8x256xf32>
    %24 = arith.addf %4, %8 : vector<1x256xf32>
    %25 = vector.broadcast %24 : vector<1x256xf32> to vector<8x256xf32>
    %26 = arith.mulf %25, %13 : vector<8x256xf32>
    %27 = vector.broadcast %8 : vector<1x256xf32> to vector<8x256xf32>
    %28 = arith.mulf %27, %23 : vector<8x256xf32>
    %29 = arith.subf %26, %28 : vector<8x256xf32>
    %30 = arith.addf %0, %29 : vector<8x256xf32>
    %31 = vector.broadcast %4 : vector<1x256xf32> to vector<8x256xf32>
    %32 = arith.mulf %31, %18 : vector<8x256xf32>
    %33 = arith.addf %26, %32 : vector<8x256xf32>
    %34 = arith.addf %0, %33 : vector<8x256xf32>
    %c1_i32_25 = arith.constant 1 : i32
    %c0_i32_26 = arith.constant 0 : i32
    %c0_i32_27 = arith.constant 0 : i32
    %35 = tpu.memref_slice %arg2[%c0_i32, %c0_i32_0, %c0_i32_26, %c0_i32_27] : memref<2x2x4x256xf32, #tpu.memory_space<vmem>> -> memref<1x1x4x256xf32, #tpu.memory_space<vmem>>
    %36 = tpu.memref_squeeze %35 : memref<1x1x4x256xf32, #tpu.memory_space<vmem>> -> memref<4x256xf32, #tpu.memory_space<vmem>>
    %37 = arith.index_cast %c1_i32_25 : i32 to index
    %c0_28 = arith.constant 0 : index
    %38 = vector.load %36[%37, %c0_28] : memref<4x256xf32, #tpu.memory_space<vmem>>, vector<1x256xf32>
    %c0_i32_29 = arith.constant 0 : i32
    %c0_i32_30 = arith.constant 0 : i32
    %39 = tpu.memref_slice %arg2[%c1_i32, %c0_i32_1, %c0_i32_29, %c0_i32_30] : memref<2x2x4x256xf32, #tpu.memory_space<vmem>> -> memref<1x1x4x256xf32, #tpu.memory_space<vmem>>
    %40 = tpu.memref_squeeze %39 : memref<1x1x4x256xf32, #tpu.memory_space<vmem>> -> memref<4x256xf32, #tpu.memory_space<vmem>>
    %41 = arith.index_cast %c1_i32_25 : i32 to index
    %c0_31 = arith.constant 0 : index
    %42 = vector.load %40[%41, %c0_31] : memref<4x256xf32, #tpu.memory_space<vmem>>, vector<1x256xf32>
    %c0_i32_32 = arith.constant 0 : i32
    %c0_i32_33 = arith.constant 0 : i32
    %c0_i32_34 = arith.constant 0 : i32
    %43 = tpu.memref_slice %arg3[%c0_i32_2, %c0_i32_32, %c0_i32_33, %c0_i32_34] : memref<3x4x8x256xf32, #tpu.memory_space<vmem>> -> memref<1x4x8x256xf32, #tpu.memory_space<vmem>>
    %44 = tpu.memref_squeeze %43 : memref<1x4x8x256xf32, #tpu.memory_space<vmem>> -> memref<4x8x256xf32, #tpu.memory_space<vmem>>
    %45 = arith.index_cast %c1_i32_25 : i32 to index
    %c0_35 = arith.constant 0 : index
    %c0_36 = arith.constant 0 : index
    %46 = vector.load %44[%45, %c0_35, %c0_36] : memref<4x8x256xf32, #tpu.memory_space<vmem>>, vector<1x8x256xf32>
    %47 = vector.shape_cast %46 : vector<1x8x256xf32> to vector<8x256xf32>
    %c0_i32_37 = arith.constant 0 : i32
    %c0_i32_38 = arith.constant 0 : i32
    %c0_i32_39 = arith.constant 0 : i32
    %48 = tpu.memref_slice %arg3[%c1_i32_3, %c0_i32_37, %c0_i32_38, %c0_i32_39] : memref<3x4x8x256xf32, #tpu.memory_space<vmem>> -> memref<1x4x8x256xf32, #tpu.memory_space<vmem>>
    %49 = tpu.memref_squeeze %48 : memref<1x4x8x256xf32, #tpu.memory_space<vmem>> -> memref<4x8x256xf32, #tpu.memory_space<vmem>>
    %50 = arith.index_cast %c1_i32_25 : i32 to index
    %c0_40 = arith.constant 0 : index
    %c0_41 = arith.constant 0 : index
    %51 = vector.load %49[%50, %c0_40, %c0_41] : memref<4x8x256xf32, #tpu.memory_space<vmem>>, vector<1x8x256xf32>
    %52 = vector.shape_cast %51 : vector<1x8x256xf32> to vector<8x256xf32>
    %c0_i32_42 = arith.constant 0 : i32
    %c0_i32_43 = arith.constant 0 : i32
    %c0_i32_44 = arith.constant 0 : i32
    %53 = tpu.memref_slice %arg3[%c2_i32, %c0_i32_42, %c0_i32_43, %c0_i32_44] : memref<3x4x8x256xf32, #tpu.memory_space<vmem>> -> memref<1x4x8x256xf32, #tpu.memory_space<vmem>>
    %54 = tpu.memref_squeeze %53 : memref<1x4x8x256xf32, #tpu.memory_space<vmem>> -> memref<4x8x256xf32, #tpu.memory_space<vmem>>
    %55 = arith.index_cast %c1_i32_25 : i32 to index
    %c0_45 = arith.constant 0 : index
    %c0_46 = arith.constant 0 : index
    %56 = vector.load %54[%55, %c0_45, %c0_46] : memref<4x8x256xf32, #tpu.memory_space<vmem>>, vector<1x8x256xf32>
    %57 = vector.shape_cast %56 : vector<1x8x256xf32> to vector<8x256xf32>
    %58 = arith.addf %38, %42 : vector<1x256xf32>
    %59 = vector.broadcast %58 : vector<1x256xf32> to vector<8x256xf32>
    %60 = arith.mulf %59, %47 : vector<8x256xf32>
    %61 = vector.broadcast %42 : vector<1x256xf32> to vector<8x256xf32>
    %62 = arith.mulf %61, %57 : vector<8x256xf32>
    %63 = arith.subf %60, %62 : vector<8x256xf32>
    %64 = arith.addf %30, %63 : vector<8x256xf32>
    %65 = vector.broadcast %38 : vector<1x256xf32> to vector<8x256xf32>
    %66 = arith.mulf %65, %52 : vector<8x256xf32>
    %67 = arith.addf %60, %66 : vector<8x256xf32>
    %68 = arith.addf %34, %67 : vector<8x256xf32>
    %c2_i32_47 = arith.constant 2 : i32
    %c0_i32_48 = arith.constant 0 : i32
    %c0_i32_49 = arith.constant 0 : i32
    %69 = tpu.memref_slice %arg2[%c0_i32, %c0_i32_0, %c0_i32_48, %c0_i32_49] : memref<2x2x4x256xf32, #tpu.memory_space<vmem>> -> memref<1x1x4x256xf32, #tpu.memory_space<vmem>>
    %70 = tpu.memref_squeeze %69 : memref<1x1x4x256xf32, #tpu.memory_space<vmem>> -> memref<4x256xf32, #tpu.memory_space<vmem>>
    %71 = arith.index_cast %c2_i32_47 : i32 to index
    %c0_50 = arith.constant 0 : index
    %72 = vector.load %70[%71, %c0_50] : memref<4x256xf32, #tpu.memory_space<vmem>>, vector<1x256xf32>
    %c0_i32_51 = arith.constant 0 : i32
    %c0_i32_52 = arith.constant 0 : i32
    %73 = tpu.memref_slice %arg2[%c1_i32, %c0_i32_1, %c0_i32_51, %c0_i32_52] : memref<2x2x4x256xf32, #tpu.memory_space<vmem>> -> memref<1x1x4x256xf32, #tpu.memory_space<vmem>>
    %74 = tpu.memref_squeeze %73 : memref<1x1x4x256xf32, #tpu.memory_space<vmem>> -> memref<4x256xf32, #tpu.memory_space<vmem>>
    %75 = arith.index_cast %c2_i32_47 : i32 to index
    %c0_53 = arith.constant 0 : index
    %76 = vector.load %74[%75, %c0_53] : memref<4x256xf32, #tpu.memory_space<vmem>>, vector<1x256xf32>
    %c0_i32_54 = arith.constant 0 : i32
    %c0_i32_55 = arith.constant 0 : i32
    %c0_i32_56 = arith.constant 0 : i32
    %77 = tpu.memref_slice %arg3[%c0_i32_2, %c0_i32_54, %c0_i32_55, %c0_i32_56] : memref<3x4x8x256xf32, #tpu.memory_space<vmem>> -> memref<1x4x8x256xf32, #tpu.memory_space<vmem>>
    %78 = tpu.memref_squeeze %77 : memref<1x4x8x256xf32, #tpu.memory_space<vmem>> -> memref<4x8x256xf32, #tpu.memory_space<vmem>>
    %79 = arith.index_cast %c2_i32_47 : i32 to index
    %c0_57 = arith.constant 0 : index
    %c0_58 = arith.constant 0 : index
    %80 = vector.load %78[%79, %c0_57, %c0_58] : memref<4x8x256xf32, #tpu.memory_space<vmem>>, vector<1x8x256xf32>
    %81 = vector.shape_cast %80 : vector<1x8x256xf32> to vector<8x256xf32>
    %c0_i32_59 = arith.constant 0 : i32
    %c0_i32_60 = arith.constant 0 : i32
    %c0_i32_61 = arith.constant 0 : i32
    %82 = tpu.memref_slice %arg3[%c1_i32_3, %c0_i32_59, %c0_i32_60, %c0_i32_61] : memref<3x4x8x256xf32, #tpu.memory_space<vmem>> -> memref<1x4x8x256xf32, #tpu.memory_space<vmem>>
    %83 = tpu.memref_squeeze %82 : memref<1x4x8x256xf32, #tpu.memory_space<vmem>> -> memref<4x8x256xf32, #tpu.memory_space<vmem>>
    %84 = arith.index_cast %c2_i32_47 : i32 to index
    %c0_62 = arith.constant 0 : index
    %c0_63 = arith.constant 0 : index
    %85 = vector.load %83[%84, %c0_62, %c0_63] : memref<4x8x256xf32, #tpu.memory_space<vmem>>, vector<1x8x256xf32>
    %86 = vector.shape_cast %85 : vector<1x8x256xf32> to vector<8x256xf32>
    %c0_i32_64 = arith.constant 0 : i32
    %c0_i32_65 = arith.constant 0 : i32
    %c0_i32_66 = arith.constant 0 : i32
    %87 = tpu.memref_slice %arg3[%c2_i32, %c0_i32_64, %c0_i32_65, %c0_i32_66] : memref<3x4x8x256xf32, #tpu.memory_space<vmem>> -> memref<1x4x8x256xf32, #tpu.memory_space<vmem>>
    %88 = tpu.memref_squeeze %87 : memref<1x4x8x256xf32, #tpu.memory_space<vmem>> -> memref<4x8x256xf32, #tpu.memory_space<vmem>>
    %89 = arith.index_cast %c2_i32_47 : i32 to index
    %c0_67 = arith.constant 0 : index
    %c0_68 = arith.constant 0 : index
    %90 = vector.load %88[%89, %c0_67, %c0_68] : memref<4x8x256xf32, #tpu.memory_space<vmem>>, vector<1x8x256xf32>
    %91 = vector.shape_cast %90 : vector<1x8x256xf32> to vector<8x256xf32>
    %92 = arith.addf %72, %76 : vector<1x256xf32>
    %93 = vector.broadcast %92 : vector<1x256xf32> to vector<8x256xf32>
    %94 = arith.mulf %93, %81 : vector<8x256xf32>
    %95 = vector.broadcast %76 : vector<1x256xf32> to vector<8x256xf32>
    %96 = arith.mulf %95, %91 : vector<8x256xf32>
    %97 = arith.subf %94, %96 : vector<8x256xf32>
    %98 = arith.addf %64, %97 : vector<8x256xf32>
    %99 = vector.broadcast %72 : vector<1x256xf32> to vector<8x256xf32>
    %100 = arith.mulf %99, %86 : vector<8x256xf32>
    %101 = arith.addf %94, %100 : vector<8x256xf32>
    %102 = arith.addf %68, %101 : vector<8x256xf32>
    %c3_i32 = arith.constant 3 : i32
    %c0_i32_69 = arith.constant 0 : i32
    %c0_i32_70 = arith.constant 0 : i32
    %103 = tpu.memref_slice %arg2[%c0_i32, %c0_i32_0, %c0_i32_69, %c0_i32_70] : memref<2x2x4x256xf32, #tpu.memory_space<vmem>> -> memref<1x1x4x256xf32, #tpu.memory_space<vmem>>
    %104 = tpu.memref_squeeze %103 : memref<1x1x4x256xf32, #tpu.memory_space<vmem>> -> memref<4x256xf32, #tpu.memory_space<vmem>>
    %105 = arith.index_cast %c3_i32 : i32 to index
    %c0_71 = arith.constant 0 : index
    %106 = vector.load %104[%105, %c0_71] : memref<4x256xf32, #tpu.memory_space<vmem>>, vector<1x256xf32>
    %c0_i32_72 = arith.constant 0 : i32
    %c0_i32_73 = arith.constant 0 : i32
    %107 = tpu.memref_slice %arg2[%c1_i32, %c0_i32_1, %c0_i32_72, %c0_i32_73] : memref<2x2x4x256xf32, #tpu.memory_space<vmem>> -> memref<1x1x4x256xf32, #tpu.memory_space<vmem>>
    %108 = tpu.memref_squeeze %107 : memref<1x1x4x256xf32, #tpu.memory_space<vmem>> -> memref<4x256xf32, #tpu.memory_space<vmem>>
    %109 = arith.index_cast %c3_i32 : i32 to index
    %c0_74 = arith.constant 0 : index
    %110 = vector.load %108[%109, %c0_74] : memref<4x256xf32, #tpu.memory_space<vmem>>, vector<1x256xf32>
    %c0_i32_75 = arith.constant 0 : i32
    %c0_i32_76 = arith.constant 0 : i32
    %c0_i32_77 = arith.constant 0 : i32
    %111 = tpu.memref_slice %arg3[%c0_i32_2, %c0_i32_75, %c0_i32_76, %c0_i32_77] : memref<3x4x8x256xf32, #tpu.memory_space<vmem>> -> memref<1x4x8x256xf32, #tpu.memory_space<vmem>>
    %112 = tpu.memref_squeeze %111 : memref<1x4x8x256xf32, #tpu.memory_space<vmem>> -> memref<4x8x256xf32, #tpu.memory_space<vmem>>
    %113 = arith.index_cast %c3_i32 : i32 to index
    %c0_78 = arith.constant 0 : index
    %c0_79 = arith.constant 0 : index
    %114 = vector.load %112[%113, %c0_78, %c0_79] : memref<4x8x256xf32, #tpu.memory_space<vmem>>, vector<1x8x256xf32>
    %115 = vector.shape_cast %114 : vector<1x8x256xf32> to vector<8x256xf32>
    %c0_i32_80 = arith.constant 0 : i32
    %c0_i32_81 = arith.constant 0 : i32
    %c0_i32_82 = arith.constant 0 : i32
    %116 = tpu.memref_slice %arg3[%c1_i32_3, %c0_i32_80, %c0_i32_81, %c0_i32_82] : memref<3x4x8x256xf32, #tpu.memory_space<vmem>> -> memref<1x4x8x256xf32, #tpu.memory_space<vmem>>
    %117 = tpu.memref_squeeze %116 : memref<1x4x8x256xf32, #tpu.memory_space<vmem>> -> memref<4x8x256xf32, #tpu.memory_space<vmem>>
    %118 = arith.index_cast %c3_i32 : i32 to index
    %c0_83 = arith.constant 0 : index
    %c0_84 = arith.constant 0 : index
    %119 = vector.load %117[%118, %c0_83, %c0_84] : memref<4x8x256xf32, #tpu.memory_space<vmem>>, vector<1x8x256xf32>
    %120 = vector.shape_cast %119 : vector<1x8x256xf32> to vector<8x256xf32>
    %c0_i32_85 = arith.constant 0 : i32
    %c0_i32_86 = arith.constant 0 : i32
    %c0_i32_87 = arith.constant 0 : i32
    %121 = tpu.memref_slice %arg3[%c2_i32, %c0_i32_85, %c0_i32_86, %c0_i32_87] : memref<3x4x8x256xf32, #tpu.memory_space<vmem>> -> memref<1x4x8x256xf32, #tpu.memory_space<vmem>>
    %122 = tpu.memref_squeeze %121 : memref<1x4x8x256xf32, #tpu.memory_space<vmem>> -> memref<4x8x256xf32, #tpu.memory_space<vmem>>
    %123 = arith.index_cast %c3_i32 : i32 to index
    %c0_88 = arith.constant 0 : index
    %c0_89 = arith.constant 0 : index
    %124 = vector.load %122[%123, %c0_88, %c0_89] : memref<4x8x256xf32, #tpu.memory_space<vmem>>, vector<1x8x256xf32>
    %125 = vector.shape_cast %124 : vector<1x8x256xf32> to vector<8x256xf32>
    %126 = arith.addf %106, %110 : vector<1x256xf32>
    %127 = vector.broadcast %126 : vector<1x256xf32> to vector<8x256xf32>
    %128 = arith.mulf %127, %115 : vector<8x256xf32>
    %129 = vector.broadcast %110 : vector<1x256xf32> to vector<8x256xf32>
    %130 = arith.mulf %129, %125 : vector<8x256xf32>
    %131 = arith.subf %128, %130 : vector<8x256xf32>
    %132 = arith.addf %98, %131 : vector<8x256xf32>
    %133 = vector.broadcast %106 : vector<1x256xf32> to vector<8x256xf32>
    %134 = arith.mulf %133, %120 : vector<8x256xf32>
    %135 = arith.addf %128, %134 : vector<8x256xf32>
    %136 = arith.addf %102, %135 : vector<8x256xf32>
    %c4_i32 = arith.constant 4 : i32
    %c0_90 = arith.constant 0 : index
    %c0_91 = arith.constant 0 : index
    %c0_92 = arith.constant 0 : index
    %c0_93 = arith.constant 0 : index
    %137 = vector.load %arg4[%c0_90, %c0_91, %c0_92, %c0_93] : memref<2x2x8x256xf32, #tpu.memory_space<vmem>>, vector<1x1x8x256xf32>
    %138 = vector.shape_cast %137 : vector<1x1x8x256xf32> to vector<8x256xf32>
    %139 = vector.shape_cast %132 : vector<8x256xf32> to vector<1x1x8x256xf32>
    tpu.vector_store %arg4[%c0_90, %c0_91, %c0_92, %c0_93], %139 {strides = array<i32>} : memref<2x2x8x256xf32, #tpu.memory_space<vmem>>, vector<1x1x8x256xf32>,
    %c1 = arith.constant 1 : index
    %c0_94 = arith.constant 0 : index
    %c0_95 = arith.constant 0 : index
    %c0_96 = arith.constant 0 : index
    %140 = vector.load %arg4[%c1, %c0_94, %c0_95, %c0_96] : memref<2x2x8x256xf32, #tpu.memory_space<vmem>>, vector<1x1x8x256xf32>
    %141 = vector.shape_cast %140 : vector<1x1x8x256xf32> to vector<8x256xf32>
    %142 = vector.shape_cast %136 : vector<8x256xf32> to vector<1x1x8x256xf32>
    tpu.vector_store %arg4[%c1, %c0_94, %c0_95, %c0_96], %142 {strides = array<i32>} : memref<2x2x8x256xf32, #tpu.memory_space<vmem>>, vector<1x1x8x256xf32>,
    %cst_97 = arith.constant 0.000000e+00 : f32
    %143 = vector.broadcast %cst_97 : f32 to vector<8x256xf32>
    %c0_i32_98 = arith.constant 0 : i32
    %c1_i32_99 = arith.constant 1 : i32
    %c1_i32_100 = arith.constant 1 : i32
    %c1_i32_101 = arith.constant 1 : i32
    %c0_i32_102 = arith.constant 0 : i32
    %c1_i32_103 = arith.constant 1 : i32
    %c2_i32_104 = arith.constant 2 : i32
    %c0_i32_105 = arith.constant 0 : i32
    %c0_i32_106 = arith.constant 0 : i32
    %c0_i32_107 = arith.constant 0 : i32
    %144 = tpu.memref_slice %arg2[%c0_i32_98, %c1_i32_99, %c0_i32_106, %c0_i32_107] : memref<2x2x4x256xf32, #tpu.memory_space<vmem>> -> memref<1x1x4x256xf32, #tpu.memory_space<vmem>>
    %145 = tpu.memref_squeeze %144 : memref<1x1x4x256xf32, #tpu.memory_space<vmem>> -> memref<4x256xf32, #tpu.memory_space<vmem>>
    %146 = arith.index_cast %c0_i32_105 : i32 to index
    %c0_108 = arith.constant 0 : index
    %147 = vector.load %145[%146, %c0_108] : memref<4x256xf32, #tpu.memory_space<vmem>>, vector<1x256xf32>
    %c0_i32_109 = arith.constant 0 : i32
    %c0_i32_110 = arith.constant 0 : i32
    %148 = tpu.memref_slice %arg2[%c1_i32_100, %c1_i32_101, %c0_i32_109, %c0_i32_110] : memref<2x2x4x256xf32, #tpu.memory_space<vmem>> -> memref<1x1x4x256xf32, #tpu.memory_space<vmem>>
    %149 = tpu.memref_squeeze %148 : memref<1x1x4x256xf32, #tpu.memory_space<vmem>> -> memref<4x256xf32, #tpu.memory_space<vmem>>
    %150 = arith.index_cast %c0_i32_105 : i32 to index
    %c0_111 = arith.constant 0 : index
    %151 = vector.load %149[%150, %c0_111] : memref<4x256xf32, #tpu.memory_space<vmem>>, vector<1x256xf32>
    %c0_i32_112 = arith.constant 0 : i32
    %c0_i32_113 = arith.constant 0 : i32
    %c0_i32_114 = arith.constant 0 : i32
    %152 = tpu.memref_slice %arg3[%c0_i32_102, %c0_i32_112, %c0_i32_113, %c0_i32_114] : memref<3x4x8x256xf32, #tpu.memory_space<vmem>> -> memref<1x4x8x256xf32, #tpu.memory_space<vmem>>
    %153 = tpu.memref_squeeze %152 : memref<1x4x8x256xf32, #tpu.memory_space<vmem>> -> memref<4x8x256xf32, #tpu.memory_space<vmem>>
    %154 = arith.index_cast %c0_i32_105 : i32 to index
    %c0_115 = arith.constant 0 : index
    %c0_116 = arith.constant 0 : index
    %155 = vector.load %153[%154, %c0_115, %c0_116] : memref<4x8x256xf32, #tpu.memory_space<vmem>>, vector<1x8x256xf32>
    %156 = vector.shape_cast %155 : vector<1x8x256xf32> to vector<8x256xf32>
    %c0_i32_117 = arith.constant 0 : i32
    %c0_i32_118 = arith.constant 0 : i32
    %c0_i32_119 = arith.constant 0 : i32
    %157 = tpu.memref_slice %arg3[%c1_i32_103, %c0_i32_117, %c0_i32_118, %c0_i32_119] : memref<3x4x8x256xf32, #tpu.memory_space<vmem>> -> memref<1x4x8x256xf32, #tpu.memory_space<vmem>>
    %158 = tpu.memref_squeeze %157 : memref<1x4x8x256xf32, #tpu.memory_space<vmem>> -> memref<4x8x256xf32, #tpu.memory_space<vmem>>
    %159 = arith.index_cast %c0_i32_105 : i32 to index
    %c0_120 = arith.constant 0 : index
    %c0_121 = arith.constant 0 : index
    %160 = vector.load %158[%159, %c0_120, %c0_121] : memref<4x8x256xf32, #tpu.memory_space<vmem>>, vector<1x8x256xf32>
    %161 = vector.shape_cast %160 : vector<1x8x256xf32> to vector<8x256xf32>
    %c0_i32_122 = arith.constant 0 : i32
    %c0_i32_123 = arith.constant 0 : i32
    %c0_i32_124 = arith.constant 0 : i32
    %162 = tpu.memref_slice %arg3[%c2_i32_104, %c0_i32_122, %c0_i32_123, %c0_i32_124] : memref<3x4x8x256xf32, #tpu.memory_space<vmem>> -> memref<1x4x8x256xf32, #tpu.memory_space<vmem>>
    %163 = tpu.memref_squeeze %162 : memref<1x4x8x256xf32, #tpu.memory_space<vmem>> -> memref<4x8x256xf32, #tpu.memory_space<vmem>>
    %164 = arith.index_cast %c0_i32_105 : i32 to index
    %c0_125 = arith.constant 0 : index
    %c0_126 = arith.constant 0 : index
    %165 = vector.load %163[%164, %c0_125, %c0_126] : memref<4x8x256xf32, #tpu.memory_space<vmem>>, vector<1x8x256xf32>
    %166 = vector.shape_cast %165 : vector<1x8x256xf32> to vector<8x256xf32>
    %167 = arith.addf %147, %151 : vector<1x256xf32>
    %168 = vector.broadcast %167 : vector<1x256xf32> to vector<8x256xf32>
    %169 = arith.mulf %168, %156 : vector<8x256xf32>
    %170 = vector.broadcast %151 : vector<1x256xf32> to vector<8x256xf32>
    %171 = arith.mulf %170, %166 : vector<8x256xf32>
    %172 = arith.subf %169, %171 : vector<8x256xf32>
    %173 = arith.addf %143, %172 : vector<8x256xf32>
    %174 = vector.broadcast %147 : vector<1x256xf32> to vector<8x256xf32>
    %175 = arith.mulf %174, %161 : vector<8x256xf32>
    %176 = arith.addf %169, %175 : vector<8x256xf32>
    %177 = arith.addf %143, %176 : vector<8x256xf32>
    %c1_i32_127 = arith.constant 1 : i32
    %c0_i32_128 = arith.constant 0 : i32
    %c0_i32_129 = arith.constant 0 : i32
    %178 = tpu.memref_slice %arg2[%c0_i32_98, %c1_i32_99, %c0_i32_128, %c0_i32_129] : memref<2x2x4x256xf32, #tpu.memory_space<vmem>> -> memref<1x1x4x256xf32, #tpu.memory_space<vmem>>
    %179 = tpu.memref_squeeze %178 : memref<1x1x4x256xf32, #tpu.memory_space<vmem>> -> memref<4x256xf32, #tpu.memory_space<vmem>>
    %180 = arith.index_cast %c1_i32_127 : i32 to index
    %c0_130 = arith.constant 0 : index
    %181 = vector.load %179[%180, %c0_130] : memref<4x256xf32, #tpu.memory_space<vmem>>, vector<1x256xf32>
    %c0_i32_131 = arith.constant 0 : i32
    %c0_i32_132 = arith.constant 0 : i32
    %182 = tpu.memref_slice %arg2[%c1_i32_100, %c1_i32_101, %c0_i32_131, %c0_i32_132] : memref<2x2x4x256xf32, #tpu.memory_space<vmem>> -> memref<1x1x4x256xf32, #tpu.memory_space<vmem>>
    %183 = tpu.memref_squeeze %182 : memref<1x1x4x256xf32, #tpu.memory_space<vmem>> -> memref<4x256xf32, #tpu.memory_space<vmem>>
    %184 = arith.index_cast %c1_i32_127 : i32 to index
    %c0_133 = arith.constant 0 : index
    %185 = vector.load %183[%184, %c0_133] : memref<4x256xf32, #tpu.memory_space<vmem>>, vector<1x256xf32>
    %c0_i32_134 = arith.constant 0 : i32
    %c0_i32_135 = arith.constant 0 : i32
    %c0_i32_136 = arith.constant 0 : i32
    %186 = tpu.memref_slice %arg3[%c0_i32_102, %c0_i32_134, %c0_i32_135, %c0_i32_136] : memref<3x4x8x256xf32, #tpu.memory_space<vmem>> -> memref<1x4x8x256xf32, #tpu.memory_space<vmem>>
    %187 = tpu.memref_squeeze %186 : memref<1x4x8x256xf32, #tpu.memory_space<vmem>> -> memref<4x8x256xf32, #tpu.memory_space<vmem>>
    %188 = arith.index_cast %c1_i32_127 : i32 to index
    %c0_137 = arith.constant 0 : index
    %c0_138 = arith.constant 0 : index
    %189 = vector.load %187[%188, %c0_137, %c0_138] : memref<4x8x256xf32, #tpu.memory_space<vmem>>, vector<1x8x256xf32>
    %190 = vector.shape_cast %189 : vector<1x8x256xf32> to vector<8x256xf32>
    %c0_i32_139 = arith.constant 0 : i32
    %c0_i32_140 = arith.constant 0 : i32
    %c0_i32_141 = arith.constant 0 : i32
    %191 = tpu.memref_slice %arg3[%c1_i32_103, %c0_i32_139, %c0_i32_140, %c0_i32_141] : memref<3x4x8x256xf32, #tpu.memory_space<vmem>> -> memref<1x4x8x256xf32, #tpu.memory_space<vmem>>
    %192 = tpu.memref_squeeze %191 : memref<1x4x8x256xf32, #tpu.memory_space<vmem>> -> memref<4x8x256xf32, #tpu.memory_space<vmem>>
    %193 = arith.index_cast %c1_i32_127 : i32 to index
    %c0_142 = arith.constant 0 : index
    %c0_143 = arith.constant 0 : index
    %194 = vector.load %192[%193, %c0_142, %c0_143] : memref<4x8x256xf32, #tpu.memory_space<vmem>>, vector<1x8x256xf32>
    %195 = vector.shape_cast %194 : vector<1x8x256xf32> to vector<8x256xf32>
    %c0_i32_144 = arith.constant 0 : i32
    %c0_i32_145 = arith.constant 0 : i32
    %c0_i32_146 = arith.constant 0 : i32
    %196 = tpu.memref_slice %arg3[%c2_i32_104, %c0_i32_144, %c0_i32_145, %c0_i32_146] : memref<3x4x8x256xf32, #tpu.memory_space<vmem>> -> memref<1x4x8x256xf32, #tpu.memory_space<vmem>>
    %197 = tpu.memref_squeeze %196 : memref<1x4x8x256xf32, #tpu.memory_space<vmem>> -> memref<4x8x256xf32, #tpu.memory_space<vmem>>
    %198 = arith.index_cast %c1_i32_127 : i32 to index
    %c0_147 = arith.constant 0 : index
    %c0_148 = arith.constant 0 : index
    %199 = vector.load %197[%198, %c0_147, %c0_148] : memref<4x8x256xf32, #tpu.memory_space<vmem>>, vector<1x8x256xf32>
    %200 = vector.shape_cast %199 : vector<1x8x256xf32> to vector<8x256xf32>
    %201 = arith.addf %181, %185 : vector<1x256xf32>
    %202 = vector.broadcast %201 : vector<1x256xf32> to vector<8x256xf32>
    %203 = arith.mulf %202, %190 : vector<8x256xf32>
    %204 = vector.broadcast %185 : vector<1x256xf32> to vector<8x256xf32>
    %205 = arith.mulf %204, %200 : vector<8x256xf32>
    %206 = arith.subf %203, %205 : vector<8x256xf32>
    %207 = arith.addf %173, %206 : vector<8x256xf32>
    %208 = vector.broadcast %181 : vector<1x256xf32> to vector<8x256xf32>
    %209 = arith.mulf %208, %195 : vector<8x256xf32>
    %210 = arith.addf %203, %209 : vector<8x256xf32>
    %211 = arith.addf %177, %210 : vector<8x256xf32>
    %c2_i32_149 = arith.constant 2 : i32
    %c0_i32_150 = arith.constant 0 : i32
    %c0_i32_151 = arith.constant 0 : i32
    %212 = tpu.memref_slice %arg2[%c0_i32_98, %c1_i32_99, %c0_i32_150, %c0_i32_151] : memref<2x2x4x256xf32, #tpu.memory_space<vmem>> -> memref<1x1x4x256xf32, #tpu.memory_space<vmem>>
    %213 = tpu.memref_squeeze %212 : memref<1x1x4x256xf32, #tpu.memory_space<vmem>> -> memref<4x256xf32, #tpu.memory_space<vmem>>
    %214 = arith.index_cast %c2_i32_149 : i32 to index
    %c0_152 = arith.constant 0 : index
    %215 = vector.load %213[%214, %c0_152] : memref<4x256xf32, #tpu.memory_space<vmem>>, vector<1x256xf32>
    %c0_i32_153 = arith.constant 0 : i32
    %c0_i32_154 = arith.constant 0 : i32
    %216 = tpu.memref_slice %arg2[%c1_i32_100, %c1_i32_101, %c0_i32_153, %c0_i32_154] : memref<2x2x4x256xf32, #tpu.memory_space<vmem>> -> memref<1x1x4x256xf32, #tpu.memory_space<vmem>>
    %217 = tpu.memref_squeeze %216 : memref<1x1x4x256xf32, #tpu.memory_space<vmem>> -> memref<4x256xf32, #tpu.memory_space<vmem>>
    %218 = arith.index_cast %c2_i32_149 : i32 to index
    %c0_155 = arith.constant 0 : index
    %219 = vector.load %217[%218, %c0_155] : memref<4x256xf32, #tpu.memory_space<vmem>>, vector<1x256xf32>
    %c0_i32_156 = arith.constant 0 : i32
    %c0_i32_157 = arith.constant 0 : i32
    %c0_i32_158 = arith.constant 0 : i32
    %220 = tpu.memref_slice %arg3[%c0_i32_102, %c0_i32_156, %c0_i32_157, %c0_i32_158] : memref<3x4x8x256xf32, #tpu.memory_space<vmem>> -> memref<1x4x8x256xf32, #tpu.memory_space<vmem>>
    %221 = tpu.memref_squeeze %220 : memref<1x4x8x256xf32, #tpu.memory_space<vmem>> -> memref<4x8x256xf32, #tpu.memory_space<vmem>>
    %222 = arith.index_cast %c2_i32_149 : i32 to index
    %c0_159 = arith.constant 0 : index
    %c0_160 = arith.constant 0 : index
    %223 = vector.load %221[%222, %c0_159, %c0_160] : memref<4x8x256xf32, #tpu.memory_space<vmem>>, vector<1x8x256xf32>
    %224 = vector.shape_cast %223 : vector<1x8x256xf32> to vector<8x256xf32>
    %c0_i32_161 = arith.constant 0 : i32
    %c0_i32_162 = arith.constant 0 : i32
    %c0_i32_163 = arith.constant 0 : i32
    %225 = tpu.memref_slice %arg3[%c1_i32_103, %c0_i32_161, %c0_i32_162, %c0_i32_163] : memref<3x4x8x256xf32, #tpu.memory_space<vmem>> -> memref<1x4x8x256xf32, #tpu.memory_space<vmem>>
    %226 = tpu.memref_squeeze %225 : memref<1x4x8x256xf32, #tpu.memory_space<vmem>> -> memref<4x8x256xf32, #tpu.memory_space<vmem>>
    %227 = arith.index_cast %c2_i32_149 : i32 to index
    %c0_164 = arith.constant 0 : index
    %c0_165 = arith.constant 0 : index
    %228 = vector.load %226[%227, %c0_164, %c0_165] : memref<4x8x256xf32, #tpu.memory_space<vmem>>, vector<1x8x256xf32>
    %229 = vector.shape_cast %228 : vector<1x8x256xf32> to vector<8x256xf32>
    %c0_i32_166 = arith.constant 0 : i32
    %c0_i32_167 = arith.constant 0 : i32
    %c0_i32_168 = arith.constant 0 : i32
    %230 = tpu.memref_slice %arg3[%c2_i32_104, %c0_i32_166, %c0_i32_167, %c0_i32_168] : memref<3x4x8x256xf32, #tpu.memory_space<vmem>> -> memref<1x4x8x256xf32, #tpu.memory_space<vmem>>
    %231 = tpu.memref_squeeze %230 : memref<1x4x8x256xf32, #tpu.memory_space<vmem>> -> memref<4x8x256xf32, #tpu.memory_space<vmem>>
    %232 = arith.index_cast %c2_i32_149 : i32 to index
    %c0_169 = arith.constant 0 : index
    %c0_170 = arith.constant 0 : index
    %233 = vector.load %231[%232, %c0_169, %c0_170] : memref<4x8x256xf32, #tpu.memory_space<vmem>>, vector<1x8x256xf32>
    %234 = vector.shape_cast %233 : vector<1x8x256xf32> to vector<8x256xf32>
    %235 = arith.addf %215, %219 : vector<1x256xf32>
    %236 = vector.broadcast %235 : vector<1x256xf32> to vector<8x256xf32>
    %237 = arith.mulf %236, %224 : vector<8x256xf32>
    %238 = vector.broadcast %219 : vector<1x256xf32> to vector<8x256xf32>
    %239 = arith.mulf %238, %234 : vector<8x256xf32>
    %240 = arith.subf %237, %239 : vector<8x256xf32>
    %241 = arith.addf %207, %240 : vector<8x256xf32>
    %242 = vector.broadcast %215 : vector<1x256xf32> to vector<8x256xf32>
    %243 = arith.mulf %242, %229 : vector<8x256xf32>
    %244 = arith.addf %237, %243 : vector<8x256xf32>
    %245 = arith.addf %211, %244 : vector<8x256xf32>
    %c3_i32_171 = arith.constant 3 : i32
    %c0_i32_172 = arith.constant 0 : i32
    %c0_i32_173 = arith.constant 0 : i32
    %246 = tpu.memref_slice %arg2[%c0_i32_98, %c1_i32_99, %c0_i32_172, %c0_i32_173] : memref<2x2x4x256xf32, #tpu.memory_space<vmem>> -> memref<1x1x4x256xf32, #tpu.memory_space<vmem>>
    %247 = tpu.memref_squeeze %246 : memref<1x1x4x256xf32, #tpu.memory_space<vmem>> -> memref<4x256xf32, #tpu.memory_space<vmem>>
    %248 = arith.index_cast %c3_i32_171 : i32 to index
    %c0_174 = arith.constant 0 : index
    %249 = vector.load %247[%248, %c0_174] : memref<4x256xf32, #tpu.memory_space<vmem>>, vector<1x256xf32>
    %c0_i32_175 = arith.constant 0 : i32
    %c0_i32_176 = arith.constant 0 : i32
    %250 = tpu.memref_slice %arg2[%c1_i32_100, %c1_i32_101, %c0_i32_175, %c0_i32_176] : memref<2x2x4x256xf32, #tpu.memory_space<vmem>> -> memref<1x1x4x256xf32, #tpu.memory_space<vmem>>
    %251 = tpu.memref_squeeze %250 : memref<1x1x4x256xf32, #tpu.memory_space<vmem>> -> memref<4x256xf32, #tpu.memory_space<vmem>>
    %252 = arith.index_cast %c3_i32_171 : i32 to index
    %c0_177 = arith.constant 0 : index
    %253 = vector.load %251[%252, %c0_177] : memref<4x256xf32, #tpu.memory_space<vmem>>, vector<1x256xf32>
    %c0_i32_178 = arith.constant 0 : i32
    %c0_i32_179 = arith.constant 0 : i32
    %c0_i32_180 = arith.constant 0 : i32
    %254 = tpu.memref_slice %arg3[%c0_i32_102, %c0_i32_178, %c0_i32_179, %c0_i32_180] : memref<3x4x8x256xf32, #tpu.memory_space<vmem>> -> memref<1x4x8x256xf32, #tpu.memory_space<vmem>>
    %255 = tpu.memref_squeeze %254 : memref<1x4x8x256xf32, #tpu.memory_space<vmem>> -> memref<4x8x256xf32, #tpu.memory_space<vmem>>
    %256 = arith.index_cast %c3_i32_171 : i32 to index
    %c0_181 = arith.constant 0 : index
    %c0_182 = arith.constant 0 : index
    %257 = vector.load %255[%256, %c0_181, %c0_182] : memref<4x8x256xf32, #tpu.memory_space<vmem>>, vector<1x8x256xf32>
    %258 = vector.shape_cast %257 : vector<1x8x256xf32> to vector<8x256xf32>
    %c0_i32_183 = arith.constant 0 : i32
    %c0_i32_184 = arith.constant 0 : i32
    %c0_i32_185 = arith.constant 0 : i32
    %259 = tpu.memref_slice %arg3[%c1_i32_103, %c0_i32_183, %c0_i32_184, %c0_i32_185] : memref<3x4x8x256xf32, #tpu.memory_space<vmem>> -> memref<1x4x8x256xf32, #tpu.memory_space<vmem>>
    %260 = tpu.memref_squeeze %259 : memref<1x4x8x256xf32, #tpu.memory_space<vmem>> -> memref<4x8x256xf32, #tpu.memory_space<vmem>>
    %261 = arith.index_cast %c3_i32_171 : i32 to index
    %c0_186 = arith.constant 0 : index
    %c0_187 = arith.constant 0 : index
    %262 = vector.load %260[%261, %c0_186, %c0_187] : memref<4x8x256xf32, #tpu.memory_space<vmem>>, vector<1x8x256xf32>
    %263 = vector.shape_cast %262 : vector<1x8x256xf32> to vector<8x256xf32>
    %c0_i32_188 = arith.constant 0 : i32
    %c0_i32_189 = arith.constant 0 : i32
    %c0_i32_190 = arith.constant 0 : i32
    %264 = tpu.memref_slice %arg3[%c2_i32_104, %c0_i32_188, %c0_i32_189, %c0_i32_190] : memref<3x4x8x256xf32, #tpu.memory_space<vmem>> -> memref<1x4x8x256xf32, #tpu.memory_space<vmem>>
    %265 = tpu.memref_squeeze %264 : memref<1x4x8x256xf32, #tpu.memory_space<vmem>> -> memref<4x8x256xf32, #tpu.memory_space<vmem>>
    %266 = arith.index_cast %c3_i32_171 : i32 to index
    %c0_191 = arith.constant 0 : index
    %c0_192 = arith.constant 0 : index
    %267 = vector.load %265[%266, %c0_191, %c0_192] : memref<4x8x256xf32, #tpu.memory_space<vmem>>, vector<1x8x256xf32>
    %268 = vector.shape_cast %267 : vector<1x8x256xf32> to vector<8x256xf32>
    %269 = arith.addf %249, %253 : vector<1x256xf32>
    %270 = vector.broadcast %269 : vector<1x256xf32> to vector<8x256xf32>
    %271 = arith.mulf %270, %258 : vector<8x256xf32>
    %272 = vector.broadcast %253 : vector<1x256xf32> to vector<8x256xf32>
    %273 = arith.mulf %272, %268 : vector<8x256xf32>
    %274 = arith.subf %271, %273 : vector<8x256xf32>
    %275 = arith.addf %241, %274 : vector<8x256xf32>
    %276 = vector.broadcast %249 : vector<1x256xf32> to vector<8x256xf32>
    %277 = arith.mulf %276, %263 : vector<8x256xf32>
    %278 = arith.addf %271, %277 : vector<8x256xf32>
    %279 = arith.addf %245, %278 : vector<8x256xf32>
    %c4_i32_193 = arith.constant 4 : i32
    %c0_194 = arith.constant 0 : index
    %c1_195 = arith.constant 1 : index
    %c0_196 = arith.constant 0 : index
    %c0_197 = arith.constant 0 : index
    %280 = vector.load %arg4[%c0_194, %c1_195, %c0_196, %c0_197] : memref<2x2x8x256xf32, #tpu.memory_space<vmem>>, vector<1x1x8x256xf32>
    %281 = vector.shape_cast %280 : vector<1x1x8x256xf32> to vector<8x256xf32>
    %282 = vector.shape_cast %275 : vector<8x256xf32> to vector<1x1x8x256xf32>
    tpu.vector_store %arg4[%c0_194, %c1_195, %c0_196, %c0_197], %282 {strides = array<i32>} : memref<2x2x8x256xf32, #tpu.memory_space<vmem>>, vector<1x1x8x256xf32>,
    %c1_198 = arith.constant 1 : index
    %c1_199 = arith.constant 1 : index
    %c0_200 = arith.constant 0 : index
    %c0_201 = arith.constant 0 : index
    %283 = vector.load %arg4[%c1_198, %c1_199, %c0_200, %c0_201] : memref<2x2x8x256xf32, #tpu.memory_space<vmem>>, vector<1x1x8x256xf32>
    %284 = vector.shape_cast %283 : vector<1x1x8x256xf32> to vector<8x256xf32>
    %285 = vector.shape_cast %279 : vector<8x256xf32> to vector<1x1x8x256xf32>
    tpu.vector_store %arg4[%c1_198, %c1_199, %c0_200, %c0_201], %285 {strides = array<i32>} : memref<2x2x8x256xf32, #tpu.memory_space<vmem>>, vector<1x1x8x256xf32>,
    return
  }
  func.func @transform_0(%arg0: i32, %arg1: i32) -> (i32, i32, i32, i32) {
    %c0_i32 = arith.constant 0 : i32
    %c0_i32_0 = arith.constant 0 : i32
    %c0_i32_1 = arith.constant 0 : i32
    %c0_i32_2 = arith.constant 0 : i32
    return %c0_i32, %c0_i32_0, %c0_i32_1, %arg0 : i32, i32, i32, i32
  }
  func.func @transform_1(%arg0: i32, %arg1: i32) -> (i32, i32, i32, i32) {
    %c0_i32 = arith.constant 0 : i32
    %c0_i32_0 = arith.constant 0 : i32
    %c0_i32_1 = arith.constant 0 : i32
    return %c0_i32, %c0_i32_0, %arg1, %arg0 : i32, i32, i32, i32
  }
  func.func @transform_2(%arg0: i32, %arg1: i32) -> (i32, i32, i32, i32) {
    %c0_i32 = arith.constant 0 : i32
    %c0_i32_0 = arith.constant 0 : i32
    %c0_i32_1 = arith.constant 0 : i32
    return %c0_i32, %c0_i32_0, %arg1, %arg0 : i32, i32, i32, i32
  }
}

</mosaic_0001>

<llo_original>
// kernel: fft_conv3d_packed.1
$region0: #{fft_conv3d_packed.1}
  #allocation0 [shape = 'u32[]', space=smem, size = 0x4, offset = 0x4, fixed_abs, tag = 'smem constant byte address 0x4 - core index']
  #allocation1 [shape = 'u32[72,128]{1,0:T(1,128)}', space=vmem, size = 0x9000, scoped, tag = 'internal scratch']
  %s0 = inlined_call_operand.vmem [shape: f32[2,2,4,256], index: 0, kind: input, shape index: {}]
  %s1 = inlined_call_operand.vmem [shape: f32[3,4,8,256], index: 1, kind: input, shape index: {}]
  %s2 = inlined_call_operand.vmem [shape: f32[2,2,8,256], index: 2, kind: output, shape index: {}]
  %s3 = sld [smem:[#allocation0]]
  $region18: #{fft_conv3d_packed.1} parent=0
    _
  %s5 = ssub.s32 1, %s3
  %s6 = scalar_select 0, %s5, %s3
  // Predicated region
  $region2: #{fft_conv3d_packed.1} parent=0 // pred_check
    _
  $region3: #{fft_conv3d_packed.1} parent=0 // pred_check_branch
    %8 = sbr.rel (0) target = $region5
  $region4: #{fft_conv3d_packed.1} parent=0 // pred_region
    _
  $region5: #{fft_conv3d_packed.1} parent=0 // pred_fallthru
    _
  // Predicated region
  $region6: #{fft_conv3d_packed.1} parent=0 // pred_check
    _
  $region7: #{fft_conv3d_packed.1} parent=0 // pred_check_branch
    %10 = sbr.rel (0) target = $region9
  $region8: #{fft_conv3d_packed.1} parent=0 // pred_region
    _
  $region9: #{fft_conv3d_packed.1} parent=0 // pred_fallthru
    _
  %v11 = vld [vmem:[%s0] ss:$4 sm:$0x3]
  %s12 = scalar_lea.vmem %s0, 16
  %v13 = vld [vmem:[%s12] ss:$4 sm:$0x3]
  %v14 = vld [vmem:[%s1] sm:$0xff]
  %v15 = vld [vmem:[%s1 + $0x8] sm:$0xff]
  %s16 = scalar_lea.vmem %s1, 64
  %v17 = vld [vmem:[%s16] sm:$0xff]
  %v18 = vld [vmem:[%s16 + $0x8] sm:$0xff]
  %s19 = scalar_lea.vmem %s1, 128
  %v20 = vld [vmem:[%s19] sm:$0xff]
  %v21 = vld [vmem:[%s19 + $0x8] sm:$0xff]
  %v22 = vadd.f32 %v11, %v13
  %v24 = vperm.slane %v22, 0
  %v25 = vperm.slane %v22, 1
  %v28 = vmul.f32 %v24, %v14
  %v29 = vmul.f32 %v25, %v15
  %v31 = vperm.slane %v13, 0
  %v32 = vperm.slane %v13, 1
  %v35 = vmul.f32 %v31, %v20
  %v36 = vmul.f32 %v32, %v21
  %v37 = vsub.f32 %v28, %v35
  %v38 = vsub.f32 %v29, %v36
  %v39 = vadd.f32 %v37, 0.0
  %v40 = vadd.f32 %v38, 0.0
  %v42 = vperm.slane %v11, 0
  %v43 = vperm.slane %v11, 1
  %v46 = vmul.f32 %v42, %v17
  %v47 = vmul.f32 %v43, %v18
  %v48 = vadd.f32 %v28, %v46
  %v49 = vadd.f32 %v29, %v47
  %v50 = vadd.f32 %v48, 0.0
  %v51 = vadd.f32 %v49, 0.0
  %s52 = scalar_lea.vmem %s0, 1
  %v53 = vld [vmem:[%s52] ss:$4 sm:$0x3]
  %s54 = scalar_lea.vmem %s12, 1
  %v55 = vld [vmem:[%s54] ss:$4 sm:$0x3]
  %s56 = scalar_lea.vmem %s1, 16
  %v57 = vld [vmem:[%s56] sm:$0xff]
  %v58 = vld [vmem:[%s56 + $0x8] sm:$0xff]
  %s59 = scalar_lea.vmem %s16, 16
  %v60 = vld [vmem:[%s59] sm:$0xff]
  %v61 = vld [vmem:[%s59 + $0x8] sm:$0xff]
  %s62 = scalar_lea.vmem %s19, 16
  %v63 = vld [vmem:[%s62] sm:$0xff]
  %v64 = vld [vmem:[%s62 + $0x8] sm:$0xff]
  %v65 = vadd.f32 %v53, %v55
  %v67 = vperm.slane %v65, 0
  %v68 = vperm.slane %v65, 1
  %v71 = vmul.f32 %v67, %v57
  %v72 = vmul.f32 %v68, %v58
  %v74 = vperm.slane %v55, 0
  %v75 = vperm.slane %v55, 1
  %v78 = vmul.f32 %v74, %v63
  %v79 = vmul.f32 %v75, %v64
  %v80 = vsub.f32 %v71, %v78
  %v81 = vsub.f32 %v72, %v79
  %v82 = vadd.f32 %v39, %v80
  %v83 = vadd.f32 %v40, %v81
  %v85 = vperm.slane %v53, 0
  %v86 = vperm.slane %v53, 1
  %v89 = vmul.f32 %v85, %v60
  %v90 = vmul.f32 %v86, %v61
  %v91 = vadd.f32 %v71, %v89
  %v92 = vadd.f32 %v72, %v90
  %v93 = vadd.f32 %v50, %v91
  %v94 = vadd.f32 %v51, %v92
  %s95 = scalar_lea.vmem %s0, 2
  %v96 = vld [vmem:[%s95] ss:$4 sm:$0x3]
  %s97 = scalar_lea.vmem %s12, 2
  %v98 = vld [vmem:[%s97] ss:$4 sm:$0x3]
  %s99 = scalar_lea.vmem %s1, 32
  %v100 = vld [vmem:[%s99] sm:$0xff]
  %v101 = vld [vmem:[%s99 + $0x8] sm:$0xff]
  %s102 = scalar_lea.vmem %s16, 32
  %v103 = vld [vmem:[%s102] sm:$0xff]
  %v104 = vld [vmem:[%s102 + $0x8] sm:$0xff]
  %s105 = scalar_lea.vmem %s19, 32
  %v106 = vld [vmem:[%s105] sm:$0xff]
  %v107 = vld [vmem:[%s105 + $0x8] sm:$0xff]
  %v108 = vadd.f32 %v96, %v98
  %v110 = vperm.slane %v108, 0
  %v111 = vperm.slane %v108, 1
  %v114 = vmul.f32 %v110, %v100
  %v115 = vmul.f32 %v111, %v101
  %v117 = vperm.slane %v98, 0
  %v118 = vperm.slane %v98, 1
  %v121 = vmul.f32 %v117, %v106
  %v122 = vmul.f32 %v118, %v107
  %v123 = vsub.f32 %v114, %v121
  %v124 = vsub.f32 %v115, %v122
  %v125 = vadd.f32 %v82, %v123
  %v126 = vadd.f32 %v83, %v124
  %v128 = vperm.slane %v96, 0
  %v129 = vperm.slane %v96, 1
  %v132 = vmul.f32 %v128, %v103
  %v133 = vmul.f32 %v129, %v104
  %v134 = vadd.f32 %v114, %v132
  %v135 = vadd.f32 %v115, %v133
  %v136 = vadd.f32 %v93, %v134
  %v137 = vadd.f32 %v94, %v135
  %s138 = scalar_lea.vmem %s0, 3
  %v139 = vld [vmem:[%s138] ss:$4 sm:$0x3]
  %s140 = scalar_lea.vmem %s12, 3
  %v141 = vld [vmem:[%s140] ss:$4 sm:$0x3]
  %s142 = scalar_lea.vmem %s1, 48
  %v143 = vld [vmem:[%s142] sm:$0xff]
  %v144 = vld [vmem:[%s142 + $0x8] sm:$0xff]
  %s145 = scalar_lea.vmem %s16, 48
  %v146 = vld [vmem:[%s145] sm:$0xff]
  %v147 = vld [vmem:[%s145 + $0x8] sm:$0xff]
  %s148 = scalar_lea.vmem %s19, 48
  %v149 = vld [vmem:[%s148] sm:$0xff]
  %v150 = vld [vmem:[%s148 + $0x8] sm:$0xff]
  %v151 = vadd.f32 %v139, %v141
  %v153 = vperm.slane %v151, 0
  %v154 = vperm.slane %v151, 1
  %v157 = vmul.f32 %v153, %v143
  %v158 = vmul.f32 %v154, %v144
  %v160 = vperm.slane %v141, 0
  %v161 = vperm.slane %v141, 1
  %v164 = vmul.f32 %v160, %v149
  %v165 = vmul.f32 %v161, %v150
  %v166 = vsub.f32 %v157, %v164
  %v167 = vsub.f32 %v158, %v165
  %v168 = vadd.f32 %v125, %v166
  %v169 = vadd.f32 %v126, %v167
  %v171 = vperm.slane %v139, 0
  %v172 = vperm.slane %v139, 1
  %v175 = vmul.f32 %v171, %v146
  %v176 = vmul.f32 %v172, %v147
  %v177 = vadd.f32 %v157, %v175
  %v178 = vadd.f32 %v158, %v176
  %v179 = vadd.f32 %v136, %v177
  %v180 = vadd.f32 %v137, %v178
  %181 = vst [vmem:[%s2] sm:$0xff] %v168
  %182 = vst [vmem:[%s2 + $0x8] sm:$0xff] %v169
  %s183 = scalar_lea.vmem %s2, 32
  %184 = vst [vmem:[%s183] sm:$0xff] %v179
  %185 = vst [vmem:[%s183 + $0x8] sm:$0xff] %v180
  %s186 = scalar_lea.vmem %s0, 8
  %v187 = vld [vmem:[%s186] ss:$4 sm:$0x3]
  %s188 = scalar_lea.vmem %s0, 24
  %v189 = vld [vmem:[%s188] ss:$4 sm:$0x3]
  %v190 = vld [vmem:[%s1] sm:$0xff]
  %v191 = vld [vmem:[%s1 + $0x8] sm:$0xff]
  %v192 = vld [vmem:[%s16] sm:$0xff]
  %v193 = vld [vmem:[%s16 + $0x8] sm:$0xff]
  %v194 = vld [vmem:[%s19] sm:$0xff]
  %v195 = vld [vmem:[%s19 + $0x8] sm:$0xff]
  %v196 = vadd.f32 %v187, %v189
  %v198 = vperm.slane %v196, 0
  %v199 = vperm.slane %v196, 1
  %v202 = vmul.f32 %v198, %v190
  %v203 = vmul.f32 %v199, %v191
  %v205 = vperm.slane %v189, 0
  %v206 = vperm.slane %v189, 1
  %v209 = vmul.f32 %v205, %v194
  %v210 = vmul.f32 %v206, %v195
  %v211 = vsub.f32 %v202, %v209
  %v212 = vsub.f32 %v203, %v210
  %v213 = vadd.f32 %v211, 0.0
  %v214 = vadd.f32 %v212, 0.0
  %v216 = vperm.slane %v187, 0
  %v217 = vperm.slane %v187, 1
  %v220 = vmul.f32 %v216, %v192
  %v221 = vmul.f32 %v217, %v193
  %v222 = vadd.f32 %v202, %v220
  %v223 = vadd.f32 %v203, %v221
  %v224 = vadd.f32 %v222, 0.0
  %v225 = vadd.f32 %v223, 0.0
  %s226 = scalar_lea.vmem %s186, 1
  %v227 = vld [vmem:[%s226] ss:$4 sm:$0x3]
  %s228 = scalar_lea.vmem %s188, 1
  %v229 = vld [vmem:[%s228] ss:$4 sm:$0x3]
  %v230 = vld [vmem:[%s56] sm:$0xff]
  %v231 = vld [vmem:[%s56 + $0x8] sm:$0xff]
  %v232 = vld [vmem:[%s59] sm:$0xff]
  %v233 = vld [vmem:[%s59 + $0x8] sm:$0xff]
  %v234 = vld [vmem:[%s62] sm:$0xff]
  %v235 = vld [vmem:[%s62 + $0x8] sm:$0xff]
  %v236 = vadd.f32 %v227, %v229
  %v238 = vperm.slane %v236, 0
  %v239 = vperm.slane %v236, 1
  %v242 = vmul.f32 %v238, %v230
  %v243 = vmul.f32 %v239, %v231
  %v245 = vperm.slane %v229, 0
  %v246 = vperm.slane %v229, 1
  %v249 = vmul.f32 %v245, %v234
  %v250 = vmul.f32 %v246, %v235
  %v251 = vsub.f32 %v242, %v249
  %v252 = vsub.f32 %v243, %v250
  %v253 = vadd.f32 %v213, %v251
  %v254 = vadd.f32 %v214, %v252
  %v256 = vperm.slane %v227, 0
  %v257 = vperm.slane %v227, 1
  %v260 = vmul.f32 %v256, %v232
  %v261 = vmul.f32 %v257, %v233
  %v262 = vadd.f32 %v242, %v260
  %v263 = vadd.f32 %v243, %v261
  %v264 = vadd.f32 %v224, %v262
  %v265 = vadd.f32 %v225, %v263
  %s266 = scalar_lea.vmem %s186, 2
  %v267 = vld [vmem:[%s266] ss:$4 sm:$0x3]
  %s268 = scalar_lea.vmem %s188, 2
  %v269 = vld [vmem:[%s268] ss:$4 sm:$0x3]
  %v270 = vld [vmem:[%s99] sm:$0xff]
  %v271 = vld [vmem:[%s99 + $0x8] sm:$0xff]
  %v272 = vld [vmem:[%s102] sm:$0xff]
  %v273 = vld [vmem:[%s102 + $0x8] sm:$0xff]
  %v274 = vld [vmem:[%s105] sm:$0xff]
  %v275 = vld [vmem:[%s105 + $0x8] sm:$0xff]
  %v276 = vadd.f32 %v267, %v269
  %v278 = vperm.slane %v276, 0
  %v279 = vperm.slane %v276, 1
  %v282 = vmul.f32 %v278, %v270
  %v283 = vmul.f32 %v279, %v271
  %v285 = vperm.slane %v269, 0
  %v286 = vperm.slane %v269, 1
  %v289 = vmul.f32 %v285, %v274
  %v290 = vmul.f32 %v286, %v275
  %v291 = vsub.f32 %v282, %v289
  %v292 = vsub.f32 %v283, %v290
  %v293 = vadd.f32 %v253, %v291
  %v294 = vadd.f32 %v254, %v292
  %v296 = vperm.slane %v267, 0
  %v297 = vperm.slane %v267, 1
  %v300 = vmul.f32 %v296, %v272
  %v301 = vmul.f32 %v297, %v273
  %v302 = vadd.f32 %v282, %v300
  %v303 = vadd.f32 %v283, %v301
  %v304 = vadd.f32 %v264, %v302
  %v305 = vadd.f32 %v265, %v303
  %s306 = scalar_lea.vmem %s186, 3
  %v307 = vld [vmem:[%s306] ss:$4 sm:$0x3]
  %s308 = scalar_lea.vmem %s188, 3
  %v309 = vld [vmem:[%s308] ss:$4 sm:$0x3]
  %v310 = vld [vmem:[%s142] sm:$0xff]
  %v311 = vld [vmem:[%s142 + $0x8] sm:$0xff]
  %v312 = vld [vmem:[%s145] sm:$0xff]
  %v313 = vld [vmem:[%s145 + $0x8] sm:$0xff]
  %v314 = vld [vmem:[%s148] sm:$0xff]
  %v315 = vld [vmem:[%s148 + $0x8] sm:$0xff]
  %v316 = vadd.f32 %v307, %v309
  %v318 = vperm.slane %v316, 0
  %v319 = vperm.slane %v316, 1
  %v322 = vmul.f32 %v318, %v310
  %v323 = vmul.f32 %v319, %v311
  %v325 = vperm.slane %v309, 0
  %v326 = vperm.slane %v309, 1
  %v329 = vmul.f32 %v325, %v314
  %v330 = vmul.f32 %v326, %v315
  %v331 = vsub.f32 %v322, %v329
  %v332 = vsub.f32 %v323, %v330
  %v333 = vadd.f32 %v293, %v331
  %v334 = vadd.f32 %v294, %v332
  %v336 = vperm.slane %v307, 0
  %v337 = vperm.slane %v307, 1
  %v340 = vmul.f32 %v336, %v312
  %v341 = vmul.f32 %v337, %v313
  %v342 = vadd.f32 %v322, %v340
  %v343 = vadd.f32 %v323, %v341
  %v344 = vadd.f32 %v304, %v342
  %v345 = vadd.f32 %v305, %v343
  %s346 = scalar_lea.vmem %s2, 16
  %347 = vst [vmem:[%s346] sm:$0xff] %v333
  %348 = vst [vmem:[%s346 + $0x8] sm:$0xff] %v334
  %s349 = scalar_lea.vmem %s2, 48
  %350 = vst [vmem:[%s349] sm:$0xff] %v344
  %351 = vst [vmem:[%s349 + $0x8] sm:$0xff] %v345
  // Predicated region
  $region10: #{fft_conv3d_packed.1} parent=0 // pred_check
    _
  $region11: #{fft_conv3d_packed.1} parent=0 // pred_check_branch
    %353 = sbr.rel (0) target = $region13
  $region12: #{fft_conv3d_packed.1} parent=0 // pred_region
    _
  $region13: #{fft_conv3d_packed.1} parent=0 // pred_fallthru
    _
  // Predicated region
  $region14: #{fft_conv3d_packed.1} parent=0 // pred_check
    _
  $region15: #{fft_conv3d_packed.1} parent=0 // pred_check_branch
    %355 = sbr.rel (0) target = $region17
  $region16: #{fft_conv3d_packed.1} parent=0 // pred_region
    _
  $region17: #{fft_conv3d_packed.1} parent=0 // pred_fallthru
    _

// kernel: reverse.1
$region0: #{reverse.1}
  #allocation0 [shape = 's32[1]{0}', space=sflag, size = 0x4, scoped, tag = 'scoped memory for reverse.1']
  %s0 = inlined_call_operand.vmem [shape: f32[2,4,16,16,3], index: 0, kind: input, shape index: {}]
  %s1 = inlined_call_operand.vmem [shape: f32[2,4,16,16,3], index: 1, kind: output, shape index: {}]
  %s2 = scalar_lea.vmem %s0, 32
  %v3 = vld [vmem:[%s2] sm:$0xff]
  %4 = vst [vmem:[%s1] sm:$0xff] %v3
  %s5 = scalar_lea.vmem %s0, 224
  %v6 = vld [vmem:[%s5] sm:$0xff]
  %s7 = scalar_lea.vmem %s1, 192
  %8 = vst [vmem:[%s7] sm:$0xff] %v6
  %s9 = scalar_lea.vmem %s0, 80
  %v10 = vld [vmem:[%s9] sm:$0xff]
  %s11 = scalar_lea.vmem %s1, 48
  %12 = vst [vmem:[%s11] sm:$0xff] %v10
  %s13 = scalar_lea.vmem %s0, 272
  %v14 = vld [vmem:[%s13] sm:$0xff]
  %s15 = scalar_lea.vmem %s1, 240
  %16 = vst [vmem:[%s15] sm:$0xff] %v14
  %s17 = scalar_lea.vmem %s0, 128
  %v18 = vld [vmem:[%s17] sm:$0xff]
  %s19 = scalar_lea.vmem %s1, 96
  %20 = vst [vmem:[%s19] sm:$0xff] %v18
  %s21 = scalar_lea.vmem %s0, 320
  %v22 = vld [vmem:[%s21] sm:$0xff]
  %s23 = scalar_lea.vmem %s1, 288
  %24 = vst [vmem:[%s23] sm:$0xff] %v22
  %s25 = scalar_lea.vmem %s0, 176
  %v26 = vld [vmem:[%s25] sm:$0xff]
  %s27 = scalar_lea.vmem %s1, 144
  %28 = vst [vmem:[%s27] sm:$0xff] %v26
  %s29 = scalar_lea.vmem %s0, 368
  %v30 = vld [vmem:[%s29] sm:$0xff]
  %s31 = scalar_lea.vmem %s1, 336
  %32 = vst [vmem:[%s31] sm:$0xff] %v30
  %s33 = scalar_lea.vmem %s0, 16
  %v34 = vld [vmem:[%s33] sm:$0xff]
  %s35 = scalar_lea.vmem %s1, 16
  %36 = vst [vmem:[%s35] sm:$0xff] %v34
  %s37 = scalar_lea.vmem %s0, 208
  %v38 = vld [vmem:[%s37] sm:$0xff]
  %s39 = scalar_lea.vmem %s1, 208
  %40 = vst [vmem:[%s39] sm:$0xff] %v38
  %s41 = scalar_lea.vmem %s0, 64
  %v42 = vld [vmem:[%s41] sm:$0xff]
  %s43 = scalar_lea.vmem %s1, 64
  %44 = vst [vmem:[%s43] sm:$0xff] %v42
  %s45 = scalar_lea.vmem %s0, 256
  %v46 = vld [vmem:[%s45] sm:$0xff]
  %s47 = scalar_lea.vmem %s1, 256
  %48 = vst [vmem:[%s47] sm:$0xff] %v46
  %s49 = scalar_lea.vmem %s0, 112
  %v50 = vld [vmem:[%s49] sm:$0xff]
  %s51 = scalar_lea.vmem %s1, 112
  %52 = vst [vmem:[%s51] sm:$0xff] %v50
  %s53 = scalar_lea.vmem %s0, 304
  %v54 = vld [vmem:[%s53] sm:$0xff]
  %s55 = scalar_lea.vmem %s1, 304
  %56 = vst [vmem:[%s55] sm:$0xff] %v54
  %s57 = scalar_lea.vmem %s0, 160
  %v58 = vld [vmem:[%s57] sm:$0xff]
  %s59 = scalar_lea.vmem %s1, 160
  %60 = vst [vmem:[%s59] sm:$0xff] %v58
  %s61 = scalar_lea.vmem %s0, 352
  %v62 = vld [vmem:[%s61] sm:$0xff]
  %s63 = scalar_lea.vmem %s1, 352
  %64 = vst [vmem:[%s63] sm:$0xff] %v62
  %v65 = vld [vmem:[%s0] sm:$0xff]
  %s66 = scalar_lea.vmem %s1, 32
  %67 = vst [vmem:[%s66] sm:$0xff] %v65
  %s68 = scalar_lea.vmem %s0, 192
  %v69 = vld [vmem:[%s68] sm:$0xff]
  %s70 = scalar_lea.vmem %s1, 224
  %71 = vst [vmem:[%s70] sm:$0xff] %v69
  %s72 = scalar_lea.vmem %s0, 48
  %v73 = vld [vmem:[%s72] sm:$0xff]
  %s74 = scalar_lea.vmem %s1, 80
  %75 = vst [vmem:[%s74] sm:$0xff] %v73
  %s76 = scalar_lea.vmem %s0, 240
  %v77 = vld [vmem:[%s76] sm:$0xff]
  %s78 = scalar_lea.vmem %s1, 272
  %79 = vst [vmem:[%s78] sm:$0xff] %v77
  %s80 = scalar_lea.vmem %s0, 96
  %v81 = vld [vmem:[%s80] sm:$0xff]
  %s82 = scalar_lea.vmem %s1, 128
  %83 = vst [vmem:[%s82] sm:$0xff] %v81
  %s84 = scalar_lea.vmem %s0, 288
  %v85 = vld [vmem:[%s84] sm:$0xff]
  %s86 = scalar_lea.vmem %s1, 320
  %87 = vst [vmem:[%s86] sm:$0xff] %v85
  %s88 = scalar_lea.vmem %s0, 144
  %v89 = vld [vmem:[%s88] sm:$0xff]
  %s90 = scalar_lea.vmem %s1, 176
  %91 = vst [vmem:[%s90] sm:$0xff] %v89
  %s92 = scalar_lea.vmem %s0, 336
  %v93 = vld [vmem:[%s92] sm:$0xff]
  %s94 = scalar_lea.vmem %s1, 368
  %95 = vst [vmem:[%s94] sm:$0xff] %v93
  %s96 = scalar_lea.vmem %s0, 40
  %v97 = vld [vmem:[%s96] sm:$0xff]
  %s98 = scalar_lea.vmem %s1, 8
  %99 = vst [vmem:[%s98] sm:$0xff] %v97
  %s100 = scalar_lea.vmem %s0, 232
  %v101 = vld [vmem:[%s100] sm:$0xff]
  %s102 = scalar_lea.vmem %s1, 200
  %103 = vst [vmem:[%s102] sm:$0xff] %v101
  %s104 = scalar_lea.vmem %s0, 88
  %v105 = vld [vmem:[%s104] sm:$0xff]
  %s106 = scalar_lea.vmem %s1, 56
  %107 = vst [vmem:[%s106] sm:$0xff] %v105
  %s108 = scalar_lea.vmem %s0, 280
  %v109 = vld [vmem:[%s108] sm:$0xff]
  %s110 = scalar_lea.vmem %s1, 248
  %111 = vst [vmem:[%s110] sm:$0xff] %v109
  %s112 = scalar_lea.vmem %s0, 136
  %v113 = vld [vmem:[%s112] sm:$0xff]
  %s114 = scalar_lea.vmem %s1, 104
  %115 = vst [vmem:[%s114] sm:$0xff] %v113
  %s116 = scalar_lea.vmem %s0, 328
  %v117 = vld [vmem:[%s116] sm:$0xff]
  %s118 = scalar_lea.vmem %s1, 296
  %119 = vst [vmem:[%s118] sm:$0xff] %v117
  %s120 = scalar_lea.vmem %s0, 184
  %v121 = vld [vmem:[%s120] sm:$0xff]
  %s122 = scalar_lea.vmem %s1, 152
  %123 = vst [vmem:[%s122] sm:$0xff] %v121
  %s124 = scalar_lea.vmem %s0, 376
  %v125 = vld [vmem:[%s124] sm:$0xff]
  %s126 = scalar_lea.vmem %s1, 344
  %127 = vst [vmem:[%s126] sm:$0xff] %v125
  %s128 = scalar_lea.vmem %s0, 24
  %v129 = vld [vmem:[%s128] sm:$0xff]
  %s130 = scalar_lea.vmem %s1, 24
  %131 = vst [vmem:[%s130] sm:$0xff] %v129
  %s132 = scalar_lea.vmem %s0, 216
  %v133 = vld [vmem:[%s132] sm:$0xff]
  %s134 = scalar_lea.vmem %s1, 216
  %135 = vst [vmem:[%s134] sm:$0xff] %v133
  %s136 = scalar_lea.vmem %s0, 72
  %v137 = vld [vmem:[%s136] sm:$0xff]
  %s138 = scalar_lea.vmem %s1, 72
  %139 = vst [vmem:[%s138] sm:$0xff] %v137
  %s140 = scalar_lea.vmem %s0, 264
  %v141 = vld [vmem:[%s140] sm:$0xff]
  %s142 = scalar_lea.vmem %s1, 264
  %143 = vst [vmem:[%s142] sm:$0xff] %v141
  %s144 = scalar_lea.vmem %s0, 120
  %v145 = vld [vmem:[%s144] sm:$0xff]
  %s146 = scalar_lea.vmem %s1, 120
  %147 = vst [vmem:[%s146] sm:$0xff] %v145
  %s148 = scalar_lea.vmem %s0, 312
  %v149 = vld [vmem:[%s148] sm:$0xff]
  %s150 = scalar_lea.vmem %s1, 312
  %151 = vst [vmem:[%s150] sm:$0xff] %v149
  %s152 = scalar_lea.vmem %s0, 168
  %v153 = vld [vmem:[%s152] sm:$0xff]
  %s154 = scalar_lea.vmem %s1, 168
  %155 = vst [vmem:[%s154] sm:$0xff] %v153
  %s156 = scalar_lea.vmem %s0, 360
  %v157 = vld [vmem:[%s156] sm:$0xff]
  %s158 = scalar_lea.vmem %s1, 360
  %159 = vst [vmem:[%s158] sm:$0xff] %v157
  %s160 = scalar_lea.vmem %s0, 8
  %v161 = vld [vmem:[%s160] sm:$0xff]
  %s162 = scalar_lea.vmem %s1, 40
  %163 = vst [vmem:[%s162] sm:$0xff] %v161
  %s164 = scalar_lea.vmem %s0, 200
  %v165 = vld [vmem:[%s164] sm:$0xff]
  %s166 = scalar_lea.vmem %s1, 232
  %167 = vst [vmem:[%s166] sm:$0xff] %v165
  %s168 = scalar_lea.vmem %s0, 56
  %v169 = vld [vmem:[%s168] sm:$0xff]
  %s170 = scalar_lea.vmem %s1, 88
  %171 = vst [vmem:[%s170] sm:$0xff] %v169
  %s172 = scalar_lea.vmem %s0, 248
  %v173 = vld [vmem:[%s172] sm:$0xff]
  %s174 = scalar_lea.vmem %s1, 280
  %175 = vst [vmem:[%s174] sm:$0xff] %v173
  %s176 = scalar_lea.vmem %s0, 104
  %v177 = vld [vmem:[%s176] sm:$0xff]
  %s178 = scalar_lea.vmem %s1, 136
  %179 = vst [vmem:[%s178] sm:$0xff] %v177
  %s180 = scalar_lea.vmem %s0, 296
  %v181 = vld [vmem:[%s180] sm:$0xff]
  %s182 = scalar_lea.vmem %s1, 328
  %183 = vst [vmem:[%s182] sm:$0xff] %v181
  %s184 = scalar_lea.vmem %s0, 152
  %v185 = vld [vmem:[%s184] sm:$0xff]
  %s186 = scalar_lea.vmem %s1, 184
  %187 = vst [vmem:[%s186] sm:$0xff] %v185
  %s188 = scalar_lea.vmem %s0, 344
  %v189 = vld [vmem:[%s188] sm:$0xff]
  %s190 = scalar_lea.vmem %s1, 376
  %191 = vst [vmem:[%s190] sm:$0xff] %v189

</llo_original>
